<compile_context>
chip_gen: v7x
topology: tpu7x:2x2x1
jax: 0.10.0
libtpu: 0.0.40
codegen_flags: <defaults>
</compile_context>

<pallas_src>
import functools
import math

import jax
import jax.numpy as jnp
from jax.experimental import pallas as pl
from jax.experimental.pallas import tpu as pltpu


LANE = 128                      # lane width / channel padding quantum
TM_MAX = 256                    # row tile (output pixels per block)
TN_MAX = 256                    # output-channel tile (multiple of 128)
VMEM_LIMIT_BYTES = 48 * 1024 * 1024   # safe on v5e/v6e (128 MiB) and v7x (64 MiB)


# ----------------------------- small helpers ------------------------------

def _round_up(x, m):
    return (x + m - 1) // m * m


def _pad_to(a, shape):
    return jnp.pad(a, [(0, t - s) for s, t in zip(a.shape, shape)])


def _pick_tm(m):
    return min(TM_MAX, _round_up(m, 8))


def _pick_tn(co_pad):
    t = TN_MAX
    while co_pad % t:
        t -= LANE
    return t


def _compiler_params():
    return pltpu.CompilerParams(
        dimension_semantics=("parallel", "parallel", "arbitrary"),
        vmem_limit_bytes=VMEM_LIMIT_BYTES)


# ----------------------------- Pallas kernels ------------------------------

def _conv_kernel(a_ref, w_ref, o_ref, acc_ref, *, relu):
    """One conv layer as a tap-wise K reduction: acc += A_tap @ W_tap."""
    k = pl.program_id(2)

    @pl.when(k == 0)
    def _():
        acc_ref[...] = jnp.zeros_like(acc_ref)

    acc_ref[...] += jnp.dot(a_ref[0], w_ref[0],
                            preferred_element_type=jnp.float32)

    @pl.when(k == pl.num_programs(2) - 1)
    def _():
        y = acc_ref[...]
        if relu:
            y = jnp.maximum(y, 0.0)
        o_ref[...] = y.astype(o_ref.dtype)


def _conv_residual_kernel(a_ref, w_ref, id_ref, wi_ref, b_ref, o_ref, acc_ref,
                          *, inner_relu):
    """Last conv fused with 1x1-stride-2 identity conv + bias + add + ReLU."""
    k = pl.program_id(2)

    @pl.when(k == 0)
    def _():
        acc_ref[...] = jnp.zeros_like(acc_ref)

    acc_ref[...] += jnp.dot(a_ref[0], w_ref[0],
                            preferred_element_type=jnp.float32)

    @pl.when(k == pl.num_programs(2) - 1)
    def _():
        y = acc_ref[...]
        if inner_relu:
            y = jnp.maximum(y, 0.0)
        ident = jnp.dot(id_ref[0], wi_ref[...],
                        preferred_element_type=jnp.float32) + b_ref[...]
        o_ref[...] = jnp.maximum(y + ident, 0.0).astype(o_ref.dtype)


# --------------------------- pallas_call wrappers ---------------------------

def pallas_conv(patches, w_taps, *, tm, relu, out_dtype):
    """patches: (T, Mpad, Cpad) bf16; w_taps: (T, Cpad, Co_pad) bf16."""
    T, mpad, cpad = patches.shape
    co_pad = w_taps.shape[-1]
    tn = _pick_tn(co_pad)
    grid = (mpad // tm, co_pad // tn, T)
    ce = pl.CostEstimate(
        flops=2 * mpad * co_pad * cpad * T,
        transcendentals=0,
        bytes_accessed=(patches.size + w_taps.size) * 2
                       + mpad * co_pad * jnp.dtype(out_dtype).itemsize)
    return pl.pallas_call(
        functools.partial(_conv_kernel, relu=relu),
        out_shape=jax.ShapeDtypeStruct((mpad, co_pad), out_dtype),
        grid=grid,
        in_specs=[
            pl.BlockSpec((1, tm, cpad), lambda i, j, k: (k, i, 0)),
            pl.BlockSpec((1, cpad, tn), lambda i, j, k: (k, 0, j)),
        ],
        out_specs=pl.BlockSpec((tm, tn), lambda i, j, k: (i, j)),
        scratch_shapes=[pltpu.VMEM((tm, tn), jnp.float32)],
        compiler_params=_compiler_params(),
        cost_estimate=ce,
    )(patches, w_taps)


def pallas_conv_residual(patches, w_taps, id_patches, id_tap, w_id, bias,
                         *, tm, inner_relu, out_dtype):
    """Last conv + fused identity(1x1,s2,bias) + residual add + final ReLU."""
    T, mpad, cpad = patches.shape
    ci_pad = id_patches.shape[-1]
    co_pad = w_taps.shape[-1]
    tn = _pick_tn(co_pad)
    grid = (mpad // tm, co_pad // tn, T)
    ce = pl.CostEstimate(
        flops=2 * mpad * co_pad * (cpad * T + ci_pad),
        transcendentals=0,
        bytes_accessed=(patches.size + w_taps.size + w_id.size) * 2
                       + mpad * ci_pad * 2 + bias.size * 4
                       + mpad * co_pad * jnp.dtype(out_dtype).itemsize)
    return pl.pallas_call(
        functools.partial(_conv_residual_kernel, inner_relu=inner_relu),
        out_shape=jax.ShapeDtypeStruct((mpad, co_pad), out_dtype),
        grid=grid,
        in_specs=[
            pl.BlockSpec((1, tm, cpad), lambda i, j, k: (k, i, 0)),
            pl.BlockSpec((1, cpad, tn), lambda i, j, k: (k, 0, j)),
            # identity-branch rows = centre tap of the downconv patch tensor
            pl.BlockSpec((1, tm, ci_pad), lambda i, j, k: (id_tap, i, 0)),
            pl.BlockSpec((ci_pad, tn), lambda i, j, k: (0, j)),
            pl.BlockSpec((1, tn), lambda i, j, k: (0, j)),
        ],
        out_specs=pl.BlockSpec((tm, tn), lambda i, j, k: (i, j)),
        scratch_shapes=[pltpu.VMEM((tm, tn), jnp.float32)],
        compiler_params=_compiler_params(),
        cost_estimate=ce,
    )(patches, w_taps, id_patches, w_id, bias)


# ------------------------------- glue (JAX) --------------------------------

def im2col_taps(x_nhwc, k, stride, pad):
    """Tap-major im2col: (k*k, N*OH*OW, C) plus the output dims (N, OH, OW)."""
    N, H, W, C = x_nhwc.shape
    xp = jnp.pad(x_nhwc, ((0, 0), (pad, pad), (pad, pad), (0, 0)))
    OH = (H + 2 * pad - k) // stride + 1
    OW = (W + 2 * pad - k) // stride + 1
    taps = []
    for kh in range(k):
        for kw in range(k):
            v = xp[:,
                   kh:kh + stride * (OH - 1) + 1:stride,
                   kw:kw + stride * (OW - 1) + 1:stride,
                   :]
            taps.append(v.reshape(N * OH * OW, C))
    return jnp.stack(taps, axis=0), (N, OH, OW)


def _prep_patches(x_nhwc, k, stride):
    patches, dims = im2col_taps(x_nhwc, k, stride, 1)
    T, M, C = patches.shape
    tm = _pick_tm(M)
    mpad = _round_up(M, tm)
    cpad = _round_up(C, LANE)
    patches = _pad_to(patches, (T, mpad, cpad)).astype(jnp.bfloat16)
    return patches, dims, M, tm


def _prep_weights(w_hwio, cpad_act):
    kh, kw, c, co = w_hwio.shape
    co_pad = _round_up(co, LANE)
    w = w_hwio.reshape(kh * kw, c, co)
    return _pad_to(w, (kh * kw, cpad_act, co_pad)).astype(jnp.bfloat16), co_pad


def init_resnet_layer_params(key, ch_in, ch_out, kernel_size, depth):
    """Deterministic synthetic init matching the module's parameter shapes."""
    keys = jax.random.split(key, depth + 2)
    layers = []
    cin = ch_in
    for d in range(1, depth + 1):
        stride = 2 if d == 1 else 1
        fan_in = cin * kernel_size * kernel_size
        w = (jax.random.normal(keys[d - 1],
                               (kernel_size, kernel_size, cin, ch_out),
                               dtype=jnp.float32)
             * (1.0 / math.sqrt(fan_in))).astype(jnp.bfloat16)   # HWIO, bias=False
        relu_flag = (d + 1 != depth)                             # exact module quirk
        layers.append({"w": w, "stride": stride, "relu": relu_flag})
        cin = ch_out
    w1x1 = (jax.random.normal(keys[depth], (1, 1, ch_in, ch_out),
                              dtype=jnp.float32)
            * (1.0 / math.sqrt(ch_in))).astype(jnp.bfloat16)
    b1x1 = jax.random.normal(keys[depth + 1], (ch_out,), dtype=jnp.float32) * 0.01
    return layers, w1x1, b1x1


def resnet_layer_forward(x_nchw, layers, w1x1, b1x1, kernel_size):
    """Full ResNet_layer forward. Input/output in NCHW to match PyTorch."""
    # With the module's fixed padding=1, residual/downconv spatial shapes only
    # line up (and the centre-tap identity trick only holds) for kernel_size=3.
    assert kernel_size == 3, "ResNet_layer residual add requires kernel_size == 3"

    x = jnp.transpose(x_nchw, (0, 2, 3, 1)).astype(jnp.bfloat16)   # -> NHWC bf16
    ch_in = x.shape[-1]
    ch_out = w1x1.shape[-1]
    id_tap = 1 * kernel_size + 1   # tap (1,1) of the s2/p1 downconv == x[:, ::2, ::2, :]

    cur = x
    down_patches = None
    out_rows = None
    dims = None
    m = None
    for li, layer in enumerate(layers):
        patches, dims, m, tm = _prep_patches(cur, kernel_size, layer["stride"])
        if li == 0:
            down_patches = patches          # reused as the identity-branch input
        w_taps, co_pad = _prep_weights(layer["w"], patches.shape[-1])

        if li == len(layers) - 1:
            ci_pad = down_patches.shape[-1]
            w_id = _pad_to(w1x1.reshape(ch_in, ch_out),
                           (ci_pad, co_pad)).astype(jnp.bfloat16)
            b_id = _pad_to(b1x1, (co_pad,)).reshape(1, co_pad).astype(jnp.float32)
            out_rows = pallas_conv_residual(
                patches, w_taps, down_patches, id_tap, w_id, b_id,
                tm=tm, inner_relu=layer["relu"], out_dtype=jnp.float32)
        else:
            y_rows = pallas_conv(patches, w_taps, tm=tm,
                                 relu=layer["relu"], out_dtype=jnp.bfloat16)
            n, oh, ow = dims
            # keep lane-padded (zero) channels; next layer's weights are padded to match
            cur = y_rows[:m].reshape(n, oh, ow, co_pad)

    n, oh, ow = dims
    out = out_rows[:m, :ch_out].reshape(n, oh, ow, ch_out)
    return jnp.transpose(out, (0, 3, 1, 2))                        # -> NCHW f32


# ---------------------------- pure-JAX reference ----------------------------

def _conv_ref(x_nhwc, w_hwio, stride, pad):
    return jax.lax.conv_general_dilated(
        x_nhwc, w_hwio,
        window_strides=(stride, stride),
        padding=((pad, pad), (pad, pad)),
        dimension_numbers=("NHWC", "HWIO", "NHWC"),
        precision=jax.lax.Precision.HIGHEST)


def reference_forward(x_nchw, layers, w1x1, b1x1):
    x = jnp.transpose(x_nchw, (0, 2, 3, 1)).astype(jnp.float32)
    identity = (_conv_ref(x, w1x1.astype(jnp.float32), 2, 0)
                + b1x1.reshape(1, 1, 1, -1))
    y = x
    for li, layer in enumerate(layers):
        y = _conv_ref(y, layer["w"].astype(jnp.float32), layer["stride"], 1)
        if layer["relu"]:
            y = jnp.maximum(y, 0.0)
        if li != len(layers) - 1:
            # mimic the kernel path's bf16 storage of intermediate activations
            y = y.astype(jnp.bfloat16).astype(jnp.float32)
    out = jnp.maximum(y + identity, 0.0)
    return jnp.transpose(out, (0, 3, 1, 2))


# ----------------------------------- main -----------------------------------

if __name__ == "__main__":
    # small, module-consistent shapes
    N, CH_IN, CH_OUT, H, W = 2, 4, 8, 16, 16
    KERNEL_SIZE, DEPTH = 3, 2

    key = jax.random.PRNGKey(0)
    k_x, k_p = jax.random.split(key)
    x = jax.random.normal(k_x, (N, CH_IN, H, W), dtype=jnp.float32)
    x = x.astype(jnp.bfloat16)          # both paths consume the same bf16 input

    layers, w1x1, b1x1 = init_resnet_layer_params(
        k_p, CH_IN, CH_OUT, KERNEL_SIZE, DEPTH)

    out = jax.block_until_ready(
        resnet_layer_forward(x, layers, w1x1, b1x1, KERNEL_SIZE))
    ref = jax.block_until_ready(reference_forward(x, layers, w1x1, b1x1))

    assert out.shape == (N, CH_OUT, H // 2, W // 2), out.shape
    max_err = float(jnp.max(jnp.abs(out - ref)))
    assert jnp.allclose(out, ref, atol=1e-2, rtol=1e-2), max_err

    print("KERNEL_OK")
</pallas_src>

<mosaic_0001>
module attributes {stable_mosaic.version = 11 : i64} {
  func.func @_conv_kernel(%arg0: i32, %arg1: i32, %arg2: i32, %arg3: memref<1x128x128xbf16, #tpu.memory_space<vmem>>, %arg4: memref<1x128x128xbf16, #tpu.memory_space<vmem>>, %arg5: memref<128x128xbf16, #tpu.memory_space<vmem>>, %arg6: memref<128x128xf32, #tpu.memory_space<vmem>>) attributes {dimension_semantics = [#tpu.dimension_semantics<parallel>, #tpu.dimension_semantics<parallel>, #tpu.dimension_semantics<arbitrary>], iteration_bounds = array<i64: 1, 1, 9>, scalar_prefetch = 0 : i64, scratch_operands = 1 : i64, tpu.core_type = #tpu.core_type<tc>, window_params = [{transform_indices = @transform_0, window_bounds = array<i64: 1, 128, 128>}, {transform_indices = @transform_1, window_bounds = array<i64: 1, 128, 128>}, {transform_indices = @transform_2, window_bounds = array<i64: 128, 128>}]} {
    %c0_i32 = arith.constant 0 : i32
    %0 = arith.cmpi eq, %arg2, %c0_i32 : i32
    %1 = arith.extui %0 : i1 to i32
    %c0_i32_0 = arith.constant 0 : i32
    %2 = arith.cmpi ne, %1, %c0_i32_0 : i32
    scf.if %2 {
      %cst_11 = arith.constant 0.000000e+00 : f32
      %14 = vector.broadcast %cst_11 : f32 to vector<128x128xf32>
      %c0_12 = arith.constant 0 : index
      %c0_13 = arith.constant 0 : index
      %15 = vector.load %arg6[%c0_12, %c0_13] : memref<128x128xf32, #tpu.memory_space<vmem>>, vector<128x128xf32>
      tpu.vector_store %arg6[%c0_12, %c0_13], %14 {strides = array<i32>} : memref<128x128xf32, #tpu.memory_space<vmem>>, vector<128x128xf32>,
    } else {
    }
    %c0 = arith.constant 0 : index
    %c0_1 = arith.constant 0 : index
    %3 = vector.load %arg6[%c0, %c0_1] : memref<128x128xf32, #tpu.memory_space<vmem>>, vector<128x128xf32>
    %c0_2 = arith.constant 0 : index
    %c0_3 = arith.constant 0 : index
    %c0_4 = arith.constant 0 : index
    %4 = vector.load %arg3[%c0_2, %c0_3, %c0_4] : memref<1x128x128xbf16, #tpu.memory_space<vmem>>, vector<1x128x128xbf16>
    %5 = vector.shape_cast %4 : vector<1x128x128xbf16> to vector<128x128xbf16>
    %c0_5 = arith.constant 0 : index
    %c0_6 = arith.constant 0 : index
    %c0_7 = arith.constant 0 : index
    %6 = vector.load %arg4[%c0_5, %c0_6, %c0_7] : memref<1x128x128xbf16, #tpu.memory_space<vmem>>, vector<1x128x128xbf16>
    %7 = vector.shape_cast %6 : vector<1x128x128xbf16> to vector<128x128xbf16>
    %cst = arith.constant dense<0.000000e+00> : vector<128x128xf32>
    %8 = tpu.matmul %5, %7, %cst {dimension_numbers = #tpu.dot_dimension_numbers<[1], [0], [0], [1], [0, 0, 1, 1], [], []>} : vector<128x128xbf16>, vector<128x128xbf16>, vector<128x128xf32> -> vector<128x128xf32>
    %9 = arith.addf %3, %8 : vector<128x128xf32>
    %c0_8 = arith.constant 0 : index
    %c0_9 = arith.constant 0 : index
    %10 = vector.load %arg6[%c0_8, %c0_9] : memref<128x128xf32, #tpu.memory_space<vmem>>, vector<128x128xf32>
    tpu.vector_store %arg6[%c0_8, %c0_9], %9 {strides = array<i32>} : memref<128x128xf32, #tpu.memory_space<vmem>>, vector<128x128xf32>,
    %c8_i32 = arith.constant 8 : i32
    %11 = arith.cmpi eq, %arg2, %c8_i32 : i32
    %12 = arith.extui %11 : i1 to i32
    %c0_i32_10 = arith.constant 0 : i32
    %13 = arith.cmpi ne, %12, %c0_i32_10 : i32
    scf.if %13 {
      %c0_11 = arith.constant 0 : index
      %c0_12 = arith.constant 0 : index
      %14 = vector.load %arg6[%c0_11, %c0_12] : memref<128x128xf32, #tpu.memory_space<vmem>>, vector<128x128xf32>
      %15 = arith.truncf %14 : vector<128x128xf32> to vector<128x128xbf16>
      %c0_13 = arith.constant 0 : index
      %c0_14 = arith.constant 0 : index
      %16 = vector.load %arg5[%c0_13, %c0_14] : memref<128x128xbf16, #tpu.memory_space<vmem>>, vector<128x128xbf16>
      tpu.vector_store %arg5[%c0_13, %c0_14], %15 {strides = array<i32>} : memref<128x128xbf16, #tpu.memory_space<vmem>>, vector<128x128xbf16>,
    } else {
    }
    return
  }
  func.func @transform_0(%arg0: i32, %arg1: i32, %arg2: i32) -> (i32, i32, i32) {
    %c0_i32 = arith.constant 0 : i32
    %c0_i32_0 = arith.constant 0 : i32
    return %arg2, %arg0, %c0_i32 : i32, i32, i32
  }
  func.func @transform_1(%arg0: i32, %arg1: i32, %arg2: i32) -> (i32, i32, i32) {
    %c0_i32 = arith.constant 0 : i32
    %c0_i32_0 = arith.constant 0 : i32
    return %arg2, %c0_i32, %arg1 : i32, i32, i32
  }
  func.func @transform_2(%arg0: i32, %arg1: i32, %arg2: i32) -> (i32, i32) {
    %c0_i32 = arith.constant 0 : i32
    return %arg0, %arg1 : i32, i32
  }
}

</mosaic_0001>

<llo_original>
// kernel: tpu_custom_call.1
$region0: #{tpu_custom_call.1}
  #allocation0 [shape = 'u32[]', space=smem, size = 0x4, offset = 0x4, fixed_abs, tag = 'smem constant byte address 0x4 - core index']
  #allocation1 [shape = 'u32[144,128]{1,0:T(1,128)}', space=vmem, size = 0x12000, scoped, tag = 'internal scratch']
  #allocation2 [shape = 'f32[128,128]{1,0:T(8,128)}', space=vmem, size = 0x10000, scoped, tag = 'scratch operand']
  %s0 = inlined_call_operand.hbm [shape: bf16[9,128,128], index: 0, kind: input, shape index: {}]
  %s1 = inlined_call_operand.hbm [shape: bf16[9,128,128], index: 1, kind: input, shape index: {}]
  %s2 = inlined_call_operand.hbm [shape: bf16[128,128], index: 2, kind: output, shape index: {}]
  %s3 = sld [smem:[#allocation0]]
  $region57: #{tpu_custom_call.1} parent=0
    _
  %s5 = ssub.s32 1, %s3
  %s6 = scalar_select 0, %s5, %s3
  $region1: #{tpu_custom_call.1} parent=0
    #allocation3 [shape = 'u8[65536]{0}', space=vmem, size = 0x10000, scoped, tag = 'input window, operand 0']
    #allocation4 [shape = 's32[2]{0}', space=sflag, size = 0x8, scoped, tag = 'scoped memory for tpu_custom_call.1']
    #allocation5 [shape = 's32[2]{0}', space=sflag, size = 0x8, scoped, tag = 'scoped memory for tpu_custom_call.1']
    #allocation6 [shape = 'u8[65536]{0}', space=vmem, size = 0x10000, scoped, tag = 'input window, operand 1']
    #allocation7 [shape = 's32[2]{0}', space=sflag, size = 0x8, scoped, tag = 'scoped memory for tpu_custom_call.1']
    #allocation8 [shape = 'u8[32768]{0}', space=vmem, size = 0x8000, scoped, tag = 'output window, operand 0, single buffered']
    %7 = vsyncpa [#allocation4], 0
    %s8 = scalar_lea.sflag [#allocation4], 1
    %9 = vsyncpa %s8, 0
    %10 = vsyncpa [#allocation7], 0
    %s11 = scalar_lea.sflag [#allocation7], 1
    %12 = vsyncpa %s11, 0
    %13 = vsyncpa [#allocation5], 0
    loop: start=0, step=1, limit=11
    $region2: #{tpu_custom_call.1} parent=1 // loop_pre_header
      _
    $region3: #{tpu_custom_call.1} parent=1 // loop_header
      %s15 = sphi 0, %s19
      %p16 = scmp.ge.s32.totalorder %s15, 11
      %s22 = sphi 0, %s41
      %s23 = sphi 0, %s37
      %s24 = sphi 0, %s33
      %s25 = sphi 0, %s22
      %s26 = sphi 0, %s23
      %s27 = sphi 0, %s24
      %s28 = sphi 0, %s25
      %s29 = sphi 0, %s26
      %s30 = sphi 0, %s27
      %s46 = sphi 0, %s48
      %s49 = sphi 0, %s46
      %s50 = sphi 0, %s49
      %s66 = sphi 0, %s50
      %s74 = sphi 0, %s76
      %s77 = sphi 0, %s74
      %s78 = sphi 0, %s77
      %s94 = sphi 0, %s78
      %s102 = sphi 0, %s104
      %s105 = sphi 0, %s102
      %s106 = sphi 0, %s105
      %s122 = sphi 0, %s106
    $region4: #{tpu_custom_call.1} parent=1 // loop_header_branch
      %18 = sbr.rel (%p16) target = $region8
    $region5: #{tpu_custom_call.1} parent=1 // loop_body
      %s20 = ssub.s32 %s15, 1
      %s21 = ssub.s32 %s15, 2
      %s31 = sadd.s32 1, %s24
      %p32 = scmp.ge.s32.totalorder %s31, 9
      %s33 = scalar_select %p32, 0, %s31
      %s34 = sadd.s32 1, %s23
      %s35 = scalar_select %p32, %s34, %s23
      %p36 = scmp.ge.s32.totalorder %s35, 1
      %s37 = scalar_select %p36, 0, %s35
      %s38 = sadd.s32 1, %s22
      %s39 = scalar_select %p36, %s38, %s22
      %p40 = scmp.ge.s32.totalorder %s39, 1
      %s41 = scalar_select %p40, 0, %s39
      %s42 = ssub.s32 %s24, %s33
      %s43 = ssub.s32 %s22, %s41
      %s44 = sor.u32 %s42, %s43
      %p45 = scmp.eq.s32.totalorder %s44, 0
      %s47 = sadd.s32 %s46, 1
      %s48 = scalar_select %p45, %s46, %s47
      %p51 = pneg %p45
      %p52 = scmp.eq.s32.totalorder %s15, 8
      %p53 = por %p51, %p52
      %p54 = scmp.ne.s32.totalorder %s46, %s49
      %p55 = scmp.eq.s32.totalorder %s15, 0
      %p56 = por %p54, %p55
      %p57 = scmp.ne.s32.totalorder %s46, %s49
      %p58 = scmp.eq.s32.totalorder %s20, 8
      %p59 = por %p57, %p58
      %p60 = scmp.ne.s32.totalorder %s49, %s50
      %p61 = scmp.eq.s32.totalorder %s20, 0
      %p62 = por %p60, %p61
      %p63 = scmp.ne.s32.totalorder %s49, %s50
      %p64 = scmp.eq.s32.totalorder %s21, 8
      %p65 = por %p63, %p64
      %p67 = scmp.ne.s32.totalorder %s50, %s66
      %p68 = scmp.eq.s32.totalorder %s21, 0
      %p69 = por %p67, %p68
      %s70 = ssub.s32 %s24, %s33
      %s71 = ssub.s32 %s23, %s37
      %s72 = sor.u32 %s70, %s71
      %p73 = scmp.eq.s32.totalorder %s72, 0
      %s75 = sadd.s32 %s74, 1
      %s76 = scalar_select %p73, %s74, %s75
      %p79 = pneg %p73
      %p80 = scmp.eq.s32.totalorder %s15, 8
      %p81 = por %p79, %p80
      %p82 = scmp.ne.s32.totalorder %s74, %s77
      %p83 = scmp.eq.s32.totalorder %s15, 0
      %p84 = por %p82, %p83
      %p85 = scmp.ne.s32.totalorder %s74, %s77
      %p86 = scmp.eq.s32.totalorder %s20, 8
      %p87 = por %p85, %p86
      %p88 = scmp.ne.s32.totalorder %s77, %s78
      %p89 = scmp.eq.s32.totalorder %s20, 0
      %p90 = por %p88, %p89
      %p91 = scmp.ne.s32.totalorder %s77, %s78
      %p92 = scmp.eq.s32.totalorder %s21, 8
      %p93 = por %p91, %p92
      %p95 = scmp.ne.s32.totalorder %s78, %s94
      %p96 = scmp.eq.s32.totalorder %s21, 0
      %p97 = por %p95, %p96
      %s98 = ssub.s32 %s22, %s41
      %s99 = ssub.s32 %s23, %s37
      %s100 = sor.u32 %s98, %s99
      %p101 = scmp.eq.s32.totalorder %s100, 0
      %s103 = sadd.s32 %s102, 1
      %s104 = scalar_select %p101, %s102, %s103
      %p107 = pneg %p101
      %p108 = scmp.eq.s32.totalorder %s15, 8
      %p109 = por %p107, %p108
      %p110 = scmp.ne.s32.totalorder %s102, %s105
      %p111 = scmp.eq.s32.totalorder %s15, 0
      %p112 = por %p110, %p111
      %p113 = scmp.ne.s32.totalorder %s102, %s105
      %p114 = scmp.eq.s32.totalorder %s20, 8
      %p115 = por %p113, %p114
      %p116 = scmp.ne.s32.totalorder %s105, %s106
      %p117 = scmp.eq.s32.totalorder %s20, 0
      %p118 = por %p116, %p117
      %p119 = scmp.ne.s32.totalorder %s105, %s106
      %p120 = scmp.eq.s32.totalorder %s21, 8
      %p121 = por %p119, %p120
      %p123 = scmp.ne.s32.totalorder %s106, %s122
      %p124 = scmp.eq.s32.totalorder %s21, 0
      %p125 = por %p123, %p124
      %p126 = scmp.le.s32.totalorder 1, %s15
      %p127 = scmp.lt.s32.totalorder %s15, 10
      %p128 = pnand %p126, %p127
      %p129 = pneg %p128
      // Predicated region
      $region9: #{tpu_custom_call.1} parent=5 // pred_check
        _
      $region10: #{tpu_custom_call.1} parent=5 // pred_check_branch
        %131 = sbr.rel (%p128) target = $region12
      $region11: #{tpu_custom_call.1} parent=5 // pred_region
        %s132 = ssub.s32 %s15, 1
      $region12: #{tpu_custom_call.1} parent=5 // pred_fallthru
        _
      %p133 = scmp.lt.s32.totalorder %s15, 9
      // Predicated region
      $region13: #{tpu_custom_call.1} parent=5 // pred_check
        %p134 = pneg %p133
      $region14: #{tpu_custom_call.1} parent=5 // pred_check_branch
        %136 = sbr.rel (%p134) target = $region16
      $region15: #{tpu_custom_call.1} parent=5 // pred_region
        // Predicated region
        $region17: #{tpu_custom_call.1} parent=15 // pred_check
          %p137 = pneg %p56
        $region18: #{tpu_custom_call.1} parent=15 // pred_check_branch
          %139 = sbr.rel (%p137) target = $region20
        $region19: #{tpu_custom_call.1} parent=15 // pred_region
          %s140 = sand.u32 %s46, 1
          %s141 = scalar_lea.sflag [#allocation4], %s140
          %s142 = sand.u32 %s46, 1
          %s143 = smul.addr %s142, 64
          %s144 = scalar_lea.vmem [#allocation3], %s143
          %s145 = smul.u32 16, %s22
          %s147 = ssub.s32 1024, 1024
          %148 = vsyncadd %s141, %s147
          %s149 = smul.addr %s24, 16
          %s150 = sadd.s32 %s145, %s149
          %s151 = smul.addr %s150, 64
          %s152 = scalar_lea.hbm %s0, %s151
          %s153 = sshll.u32 %s144, 4
          %s154 = int_to_ptr.vmem [resolvable:$true] %s153
          %159 = dma.hbm_to_vmem [thread:$0]  %s152, 1024, %s154, %s141, 64, 64, 4
        $region20: #{tpu_custom_call.1} parent=15 // pred_fallthru
          _
        // Predicated region
        $region21: #{tpu_custom_call.1} parent=15 // pred_check
          %p160 = pneg %p84
        $region22: #{tpu_custom_call.1} parent=15 // pred_check_branch
          %162 = sbr.rel (%p160) target = $region24
        $region23: #{tpu_custom_call.1} parent=15 // pred_region
          %s163 = sand.u32 %s74, 1
          %s164 = scalar_lea.sflag [#allocation7], %s163
          %s165 = sand.u32 %s74, 1
          %s166 = smul.addr %s165, 64
          %s167 = scalar_lea.vmem [#allocation6], %s166
          %s169 = ssub.s32 1024, 1024
          %170 = vsyncadd %s164, %s169
          %s171 = smul.addr %s24, 16
          %s172 = sadd.s32 %s23, %s171
          %s173 = smul.addr %s172, 64
          %s174 = scalar_lea.hbm %s1, %s173
          %s175 = sshll.u32 %s167, 4
          %s176 = int_to_ptr.vmem [resolvable:$true] %s175
          %181 = dma.hbm_to_vmem [thread:$0]  %s174, 1024, %s176, %s164, 64, 64, 4
        $region24: #{tpu_custom_call.1} parent=15 // pred_fallthru
          _
      $region16: #{tpu_custom_call.1} parent=5 // pred_fallthru
        _
      %p182 = scmp.le.s32.totalorder 1, %s15
      %p183 = scmp.lt.s32.totalorder %s15, 10
      %p184 = pnand %p182, %p183
      %p185 = pneg %p184
      // Predicated region
      $region25: #{tpu_custom_call.1} parent=5 // pred_check
        _
      $region26: #{tpu_custom_call.1} parent=5 // pred_check_branch
        %187 = sbr.rel (%p184) target = $region28
      $region27: #{tpu_custom_call.1} parent=5 // pred_region
        %s188 = ssub.s32 %s15, 1
        %s189 = sand.u32 %s49, 1
        %s190 = scalar_lea.sflag [#allocation4], %s189
        %s191 = sand.u32 %s49, 1
        %s192 = smul.addr %s191, 64
        %s193 = scalar_lea.vmem [#allocation3], %s192
        // Predicated region
        $region29: #{tpu_custom_call.1} parent=27 // pred_check
          %p194 = pneg %p62
        $region30: #{tpu_custom_call.1} parent=27 // pred_check_branch
          %196 = sbr.rel (%p194) target = $region32
        $region31: #{tpu_custom_call.1} parent=27 // pred_region
          %197 = dma.done %s190, 1024
        $region32: #{tpu_custom_call.1} parent=27 // pred_fallthru
          _
        %s198 = sand.u32 %s77, 1
        %s199 = scalar_lea.sflag [#allocation7], %s198
        %s200 = sand.u32 %s77, 1
        %s201 = smul.addr %s200, 64
        %s202 = scalar_lea.vmem [#allocation6], %s201
        // Predicated region
        $region33: #{tpu_custom_call.1} parent=27 // pred_check
          %p203 = pneg %p90
        $region34: #{tpu_custom_call.1} parent=27 // pred_check_branch
          %205 = sbr.rel (%p203) target = $region36
        $region35: #{tpu_custom_call.1} parent=27 // pred_region
          %206 = dma.done %s199, 1024
        $region36: #{tpu_custom_call.1} parent=27 // pred_fallthru
          _
        %s207 = sand.u32 %s49, 1
        %s208 = scalar_lea.sflag [#allocation4], %s207
        %s209 = sand.u32 %s49, 1
        %s210 = smul.addr %s209, 64
        %s211 = scalar_lea.vmem [#allocation3], %s210
        %p212 = pneg %p62
        %p213 = pneg %p59
        %s214 = sand.u32 %s77, 1
        %s215 = scalar_lea.sflag [#allocation7], %s214
        %s216 = sand.u32 %s77, 1
        %s217 = smul.addr %s216, 64
        %s218 = scalar_lea.vmem [#allocation6], %s217
        %p219 = pneg %p90
        %p220 = pneg %p87
        %p221 = pneg %p118
        %p222 = pneg %p115
        %s223 = smul.u32 16, %s25
        %s224 = smul.u32 16, %s25
        %p226 = scmp.eq.s32.totalorder %s27, 0
        // Predicated region
        $region37: #{tpu_custom_call.1} parent=27 // pred_check
          %p227 = pneg %p226
        $region38: #{tpu_custom_call.1} parent=27 // pred_check_branch
          %229 = sbr.rel (%p227) target = $region40
        $region39: #{tpu_custom_call.1} parent=27 // pred_region
          %230 = vst [vmem:[#allocation2] sm:$0xff] 0.0
          %231 = vst [vmem:[#allocation2 + $0x8] sm:$0xff] 0.0
          %232 = vst [vmem:[#allocation2 + $0x10] sm:$0xff] 0.0
          %233 = vst [vmem:[#allocation2 + $0x18] sm:$0xff] 0.0
          %234 = vst [vmem:[#allocation2 + $0x20] sm:$0xff] 0.0
          %235 = vst [vmem:[#allocation2 + $0x28] sm:$0xff] 0.0
          %236 = vst [vmem:[#allocation2 + $0x30] sm:$0xff] 0.0
          %237 = vst [vmem:[#allocation2 + $0x38] sm:$0xff] 0.0
          %238 = vst [vmem:[#allocation2 + $0x40] sm:$0xff] 0.0
          %239 = vst [vmem:[#allocation2 + $0x48] sm:$0xff] 0.0
          %240 = vst [vmem:[#allocation2 + $0x50] sm:$0xff] 0.0
          %241 = vst [vmem:[#allocation2 + $0x58] sm:$0xff] 0.0
          %242 = vst [vmem:[#allocation2 + $0x60] sm:$0xff] 0.0
          %243 = vst [vmem:[#allocation2 + $0x68] sm:$0xff] 0.0
          %244 = vst [vmem:[#allocation2 + $0x70] sm:$0xff] 0.0
          %245 = vst [vmem:[#allocation2 + $0x78] sm:$0xff] 0.0
        $region40: #{tpu_custom_call.1} parent=27 // pred_fallthru
          _
        %v246 = vld [vmem:[#allocation2] sm:$0xff]
        %v247 = vld [vmem:[#allocation2 + $0x8] sm:$0xff]
        %v248 = vld [vmem:[#allocation2 + $0x10] sm:$0xff]
        %v249 = vld [vmem:[#allocation2 + $0x18] sm:$0xff]
        %v250 = vld [vmem:[#allocation2 + $0x20] sm:$0xff]
        %v251 = vld [vmem:[#allocation2 + $0x28] sm:$0xff]
        %v252 = vld [vmem:[#allocation2 + $0x30] sm:$0xff]
        %v253 = vld [vmem:[#allocation2 + $0x38] sm:$0xff]
        %v254 = vld [vmem:[#allocation2 + $0x40] sm:$0xff]
        %v255 = vld [vmem:[#allocation2 + $0x48] sm:$0xff]
        %v256 = vld [vmem:[#allocation2 + $0x50] sm:$0xff]
        %v257 = vld [vmem:[#allocation2 + $0x58] sm:$0xff]
        %v258 = vld [vmem:[#allocation2 + $0x60] sm:$0xff]
        %v259 = vld [vmem:[#allocation2 + $0x68] sm:$0xff]
        %v260 = vld [vmem:[#allocation2 + $0x70] sm:$0xff]
        %v261 = vld [vmem:[#allocation2 + $0x78] sm:$0xff]
        %v262 = vld [vmem:[%s193] sm:$0xf]
        %v263 = vld [vmem:[%s193 + $0x4] sm:$0xf]
        %v264 = vld [vmem:[%s193 + $0x8] sm:$0xf]
        %v265 = vld [vmem:[%s193 + $0xc] sm:$0xf]
        %v266 = vld [vmem:[%s193 + $0x10] sm:$0xf]
        %v267 = vld [vmem:[%s193 + $0x14] sm:$0xf]
        %v268 = vld [vmem:[%s193 + $0x18] sm:$0xf]
        %v269 = vld [vmem:[%s193 + $0x1c] sm:$0xf]
        %v270 = vld [vmem:[%s193 + $0x20] sm:$0xf]
        %v271 = vld [vmem:[%s193 + $0x24] sm:$0xf]
        %v272 = vld [vmem:[%s193 + $0x28] sm:$0xf]
        %v273 = vld [vmem:[%s193 + $0x2c] sm:$0xf]
        %v274 = vld [vmem:[%s193 + $0x30] sm:$0xf]
        %v275 = vld [vmem:[%s193 + $0x34] sm:$0xf]
        %v276 = vld [vmem:[%s193 + $0x38] sm:$0xf]
        %v277 = vld [vmem:[%s193 + $0x3c] sm:$0xf]
        %v278 = vld [vmem:[%s202] sm:$0xf]
        %v279 = vld [vmem:[%s202 + $0x4] sm:$0xf]
        %v280 = vld [vmem:[%s202 + $0x8] sm:$0xf]
        %v281 = vld [vmem:[%s202 + $0xc] sm:$0xf]
        %v282 = vld [vmem:[%s202 + $0x10] sm:$0xf]
        %v283 = vld [vmem:[%s202 + $0x14] sm:$0xf]
        %v284 = vld [vmem:[%s202 + $0x18] sm:$0xf]
        %v285 = vld [vmem:[%s202 + $0x1c] sm:$0xf]
        %v286 = vld [vmem:[%s202 + $0x20] sm:$0xf]
        %v287 = vld [vmem:[%s202 + $0x24] sm:$0xf]
        %v288 = vld [vmem:[%s202 + $0x28] sm:$0xf]
        %v289 = vld [vmem:[%s202 + $0x2c] sm:$0xf]
        %v290 = vld [vmem:[%s202 + $0x30] sm:$0xf]
        %v291 = vld [vmem:[%s202 + $0x34] sm:$0xf]
        %v292 = vld [vmem:[%s202 + $0x38] sm:$0xf]
        %v293 = vld [vmem:[%s202 + $0x3c] sm:$0xf]
        %v310 = vunpack.c.l.b16 %v262
        %v311 = vunpack.c.l.b16 %v263
        %v312 = vunpack.c.l.b16 %v264
        %v313 = vunpack.c.l.b16 %v265
        %v314 = vunpack.c.l.b16 %v266
        %v315 = vunpack.c.l.b16 %v267
        %v316 = vunpack.c.l.b16 %v268
        %v317 = vunpack.c.l.b16 %v269
        %v318 = vunpack.c.l.b16 %v270
        %v319 = vunpack.c.l.b16 %v271
        %v320 = vunpack.c.l.b16 %v272
        %v321 = vunpack.c.l.b16 %v273
        %v322 = vunpack.c.l.b16 %v274
        %v323 = vunpack.c.l.b16 %v275
        %v324 = vunpack.c.l.b16 %v276
        %v325 = vunpack.c.l.b16 %v277
        %v326 = vpack.c.b16 %v311, %v310
        %v327 = vpack.c.b16 %v313, %v312
        %v328 = vpack.c.b16 %v315, %v314
        %v329 = vpack.c.b16 %v317, %v316
        %v330 = vpack.c.b16 %v319, %v318
        %v331 = vpack.c.b16 %v321, %v320
        %v332 = vpack.c.b16 %v323, %v322
        %v333 = vpack.c.b16 %v325, %v324
        %v358 = vunpack.c.l.b16 %v278
        %v359 = vunpack.c.l.b16 %v279
        %v360 = vunpack.c.l.b16 %v280
        %v361 = vunpack.c.l.b16 %v281
        %v362 = vunpack.c.l.b16 %v282
        %v363 = vunpack.c.l.b16 %v283
        %v364 = vunpack.c.l.b16 %v284
        %v365 = vunpack.c.l.b16 %v285
        %v366 = vunpack.c.l.b16 %v286
        %v367 = vunpack.c.l.b16 %v287
        %v368 = vunpack.c.l.b16 %v288
        %v369 = vunpack.c.l.b16 %v289
        %v370 = vunpack.c.l.b16 %v290
        %v371 = vunpack.c.l.b16 %v291
        %v372 = vunpack.c.l.b16 %v292
        %v373 = vunpack.c.l.b16 %v293
        %v374 = vpack.c.b16 %v359, %v358
        %v375 = vpack.c.b16 %v361, %v360
        %v376 = vpack.c.b16 %v363, %v362
        %v377 = vpack.c.b16 %v365, %v364
        %v378 = vpack.c.b16 %v367, %v366
        %v379 = vpack.c.b16 %v369, %v368
        %v380 = vpack.c.b16 %v371, %v370
        %v381 = vpack.c.b16 %v373, %v372
        %390 = vmatprep.subr.bf16.mxu0 0
        %391 = vmatpush1.bf16.msra.mxu0 %v374
        %392 = vmatprep.subr.bf16.mxu0 0
        %393 = vmatpush1.bf16.msra.mxu0 %v375
        %394 = vmatprep.subr.bf16.mxu0 0
        %395 = vmatpush1.bf16.msra.mxu0 %v376
        %396 = vmatprep.subr.bf16.mxu0 0
        %397 = vmatpush1.bf16.msra.mxu0 %v377
        %398 = vmatprep.subr.bf16.mxu0 0
        %399 = vmatpush1.bf16.msra.mxu0 %v378
        %400 = vmatprep.subr.bf16.mxu0 0
        %401 = vmatpush1.bf16.msra.mxu0 %v379
        %402 = vmatprep.subr.bf16.mxu0 0
        %403 = vmatpush1.bf16.msra.mxu0 %v380
        %404 = vmatprep.subr.bf16.mxu0 0
        %405 = vmatpush1.bf16.msra.mxu0 %v381
        %406 = vmatprep.subr.bf16.mxu0 0
        %407 = vmatpush1.bf16.msra.mxu0 0
        %408 = vmatprep.subr.bf16.mxu0 0
        %409 = vmatpush1.bf16.msra.mxu0 0
        %410 = vmatprep.subr.bf16.mxu0 0
        %411 = vmatpush1.bf16.msra.mxu0 0
        %412 = vmatprep.subr.bf16.mxu0 0
        %413 = vmatpush1.bf16.msra.mxu0 0
        %414 = vmatprep.subr.bf16.mxu0 0
        %415 = vmatpush1.bf16.msra.mxu0 0
        %416 = vmatprep.subr.bf16.mxu0 0
        %417 = vmatpush1.bf16.msra.mxu0 0
        %418 = vmatprep.subr.bf16.mxu0 0
        %419 = vmatpush1.bf16.msra.mxu0 0
        %420 = vmatprep.subr.bf16.mxu0 0
        %421 = vmatpush1.bf16.msra.mxu0 0
        %422 = vmatprep.mubr.bf16.mxu0 0
        %423 = vmatmul.mubr.bf16.gmra.mrb[0].mxu0 %v326
        %v424 = vpop.f32.mrb[0].mxu0
        %v425 = vadd.f32 0.0, %v424
        %v426 = vpop.f32.mrb[0].mxu0
        %v427 = vpop.f32.mrb[0].mxu0
        %v428 = vadd.f32 0.0, %v427
        %v429 = vpop.f32.mrb[0].mxu0
        %430 = vmatprep.mubr.bf16.mxu0 0
        %431 = vmatmul.mubr.bf16.gmra.mrb[0].mxu0 %v327
        %v432 = vpop.f32.mrb[0].mxu0
        %v433 = vadd.f32 0.0, %v432
        %v434 = vpop.f32.mrb[0].mxu0
        %v435 = vpop.f32.mrb[0].mxu0
        %v436 = vadd.f32 0.0, %v435
        %v437 = vpop.f32.mrb[0].mxu0
        %438 = vmatprep.mubr.bf16.mxu0 0
        %439 = vmatmul.mubr.bf16.gmra.mrb[0].mxu0 %v328
        %v440 = vpop.f32.mrb[0].mxu0
        %v441 = vadd.f32 0.0, %v440
        %v442 = vpop.f32.mrb[0].mxu0
        %v443 = vpop.f32.mrb[0].mxu0
        %v444 = vadd.f32 0.0, %v443
        %v445 = vpop.f32.mrb[0].mxu0
        %446 = vmatprep.mubr.bf16.mxu0 0
        %447 = vmatmul.mubr.bf16.gmra.mrb[0].mxu0 %v329
        %v448 = vpop.f32.mrb[0].mxu0
        %v449 = vadd.f32 0.0, %v448
        %v450 = vpop.f32.mrb[0].mxu0
        %v451 = vpop.f32.mrb[0].mxu0
        %v452 = vadd.f32 0.0, %v451
        %v453 = vpop.f32.mrb[0].mxu0
        %454 = vmatprep.mubr.bf16.mxu0 0
        %455 = vmatmul.mubr.bf16.gmra.mrb[0].mxu0 %v330
        %v456 = vpop.f32.mrb[0].mxu0
        %v457 = vadd.f32 0.0, %v456
        %v458 = vpop.f32.mrb[0].mxu0
        %v459 = vpop.f32.mrb[0].mxu0
        %v460 = vadd.f32 0.0, %v459
        %v461 = vpop.f32.mrb[0].mxu0
        %462 = vmatprep.mubr.bf16.mxu0 0
        %463 = vmatmul.mubr.bf16.gmra.mrb[0].mxu0 %v331
        %v464 = vpop.f32.mrb[0].mxu0
        %v465 = vadd.f32 0.0, %v464
        %v466 = vpop.f32.mrb[0].mxu0
        %v467 = vpop.f32.mrb[0].mxu0
        %v468 = vadd.f32 0.0, %v467
        %v469 = vpop.f32.mrb[0].mxu0
        %470 = vmatprep.mubr.bf16.mxu0 0
        %471 = vmatmul.mubr.bf16.gmra.mrb[0].mxu0 %v332
        %v472 = vpop.f32.mrb[0].mxu0
        %v473 = vadd.f32 0.0, %v472
        %v474 = vpop.f32.mrb[0].mxu0
        %v475 = vpop.f32.mrb[0].mxu0
        %v476 = vadd.f32 0.0, %v475
        %v477 = vpop.f32.mrb[0].mxu0
        %478 = vmatprep.mubr.bf16.mxu0 0
        %479 = vmatmul.mubr.bf16.gmra.mrb[0].mxu0 %v333
        %v480 = vpop.f32.mrb[0].mxu0
        %v481 = vadd.f32 0.0, %v480
        %v482 = vpop.f32.mrb[0].mxu0
        %v483 = vpop.f32.mrb[0].mxu0
        %v484 = vadd.f32 0.0, %v483
        %v485 = vpop.f32.mrb[0].mxu0
        %486 = vdwg.mxu0
        %v487 = vadd.f32 %v246, %v425
        %v488 = vadd.f32 %v247, %v428
        %v489 = vadd.f32 %v248, %v433
        %v490 = vadd.f32 %v249, %v436
        %v491 = vadd.f32 %v250, %v441
        %v492 = vadd.f32 %v251, %v444
        %v493 = vadd.f32 %v252, %v449
        %v494 = vadd.f32 %v253, %v452
        %v495 = vadd.f32 %v254, %v457
        %v496 = vadd.f32 %v255, %v460
        %v497 = vadd.f32 %v256, %v465
        %v498 = vadd.f32 %v257, %v468
        %v499 = vadd.f32 %v258, %v473
        %v500 = vadd.f32 %v259, %v476
        %v501 = vadd.f32 %v260, %v481
        %v502 = vadd.f32 %v261, %v484
        %503 = vst [vmem:[#allocation2] sm:$0xff] %v487
        %504 = vst [vmem:[#allocation2 + $0x8] sm:$0xff] %v488
        %505 = vst [vmem:[#allocation2 + $0x10] sm:$0xff] %v489
        %506 = vst [vmem:[#allocation2 + $0x18] sm:$0xff] %v490
        %507 = vst [vmem:[#allocation2 + $0x20] sm:$0xff] %v491
        %508 = vst [vmem:[#allocation2 + $0x28] sm:$0xff] %v492
        %509 = vst [vmem:[#allocation2 + $0x30] sm:$0xff] %v493
        %510 = vst [vmem:[#allocation2 + $0x38] sm:$0xff] %v494
        %511 = vst [vmem:[#allocation2 + $0x40] sm:$0xff] %v495
        %512 = vst [vmem:[#allocation2 + $0x48] sm:$0xff] %v496
        %513 = vst [vmem:[#allocation2 + $0x50] sm:$0xff] %v497
        %514 = vst [vmem:[#allocation2 + $0x58] sm:$0xff] %v498
        %515 = vst [vmem:[#allocation2 + $0x60] sm:$0xff] %v499
        %516 = vst [vmem:[#allocation2 + $0x68] sm:$0xff] %v500
        %517 = vst [vmem:[#allocation2 + $0x70] sm:$0xff] %v501
        %518 = vst [vmem:[#allocation2 + $0x78] sm:$0xff] %v502
        %p519 = scmp.eq.s32.totalorder %s27, 8
        // Predicated region
        $region41: #{tpu_custom_call.1} parent=27 // pred_check
          %p520 = pneg %p519
        $region42: #{tpu_custom_call.1} parent=27 // pred_check_branch
          %522 = sbr.rel (%p520) target = $region44
        $region43: #{tpu_custom_call.1} parent=27 // pred_region
          %v523 = vld [vmem:[#allocation2] sm:$0xff]
          %v524 = vld [vmem:[#allocation2 + $0x8] sm:$0xff]
          %v525 = vld [vmem:[#allocation2 + $0x10] sm:$0xff]
          %v526 = vld [vmem:[#allocation2 + $0x18] sm:$0xff]
          %v527 = vld [vmem:[#allocation2 + $0x20] sm:$0xff]
          %v528 = vld [vmem:[#allocation2 + $0x28] sm:$0xff]
          %v529 = vld [vmem:[#allocation2 + $0x30] sm:$0xff]
          %v530 = vld [vmem:[#allocation2 + $0x38] sm:$0xff]
          %v531 = vld [vmem:[#allocation2 + $0x40] sm:$0xff]
          %v532 = vld [vmem:[#allocation2 + $0x48] sm:$0xff]
          %v533 = vld [vmem:[#allocation2 + $0x50] sm:$0xff]
          %v534 = vld [vmem:[#allocation2 + $0x58] sm:$0xff]
          %v535 = vld [vmem:[#allocation2 + $0x60] sm:$0xff]
          %v536 = vld [vmem:[#allocation2 + $0x68] sm:$0xff]
          %v537 = vld [vmem:[#allocation2 + $0x70] sm:$0xff]
          %v538 = vld [vmem:[#allocation2 + $0x78] sm:$0xff]
          %v539 = vpack.c.bf16 %v524, %v523
          %v540 = vpack.c.bf16 %v526, %v525
          %v541 = vpack.c.bf16 %v528, %v527
          %v542 = vpack.c.bf16 %v530, %v529
          %v543 = vpack.c.bf16 %v532, %v531
          %v544 = vpack.c.bf16 %v534, %v533
          %v545 = vpack.c.bf16 %v536, %v535
          %v546 = vpack.c.bf16 %v538, %v537
          %v555 = vunpack.c.l.b16 %v539
          %v556 = vunpack.c.h.b16 %v539
          %v557 = vunpack.c.l.b16 %v540
          %v558 = vunpack.c.h.b16 %v540
          %v559 = vunpack.c.l.b16 %v541
          %v560 = vunpack.c.h.b16 %v541
          %v561 = vunpack.c.l.b16 %v542
          %v562 = vunpack.c.h.b16 %v542
          %v563 = vunpack.c.l.b16 %v543
          %v564 = vunpack.c.h.b16 %v543
          %v565 = vunpack.c.l.b16 %v544
          %v566 = vunpack.c.h.b16 %v544
          %v567 = vunpack.c.l.b16 %v545
          %v568 = vunpack.c.h.b16 %v545
          %v569 = vunpack.c.l.b16 %v546
          %v570 = vunpack.c.h.b16 %v546
          %v571 = vpack.c.b16 %v555, %v555
          %v572 = vpack.c.b16 %v556, %v556
          %v573 = vpack.c.b16 %v557, %v557
          %v574 = vpack.c.b16 %v558, %v558
          %v575 = vpack.c.b16 %v559, %v559
          %v576 = vpack.c.b16 %v560, %v560
          %v577 = vpack.c.b16 %v561, %v561
          %v578 = vpack.c.b16 %v562, %v562
          %v579 = vpack.c.b16 %v563, %v563
          %v580 = vpack.c.b16 %v564, %v564
          %v581 = vpack.c.b16 %v565, %v565
          %v582 = vpack.c.b16 %v566, %v566
          %v583 = vpack.c.b16 %v567, %v567
          %v584 = vpack.c.b16 %v568, %v568
          %v585 = vpack.c.b16 %v569, %v569
          %v586 = vpack.c.b16 %v570, %v570
          %603 = vst [vmem:[#allocation8] sm:$0xf] %v571
          %604 = vst [vmem:[#allocation8 + $0x4] sm:$0xf] %v572
          %605 = vst [vmem:[#allocation8 + $0x8] sm:$0xf] %v573
          %606 = vst [vmem:[#allocation8 + $0xc] sm:$0xf] %v574
          %607 = vst [vmem:[#allocation8 + $0x10] sm:$0xf] %v575
          %608 = vst [vmem:[#allocation8 + $0x14] sm:$0xf] %v576
          %609 = vst [vmem:[#allocation8 + $0x18] sm:$0xf] %v577
          %610 = vst [vmem:[#allocation8 + $0x1c] sm:$0xf] %v578
          %611 = vst [vmem:[#allocation8 + $0x20] sm:$0xf] %v579
          %612 = vst [vmem:[#allocation8 + $0x24] sm:$0xf] %v580
          %613 = vst [vmem:[#allocation8 + $0x28] sm:$0xf] %v581
          %614 = vst [vmem:[#allocation8 + $0x2c] sm:$0xf] %v582
          %615 = vst [vmem:[#allocation8 + $0x30] sm:$0xf] %v583
          %616 = vst [vmem:[#allocation8 + $0x34] sm:$0xf] %v584
          %617 = vst [vmem:[#allocation8 + $0x38] sm:$0xf] %v585
          %618 = vst [vmem:[#allocation8 + $0x3c] sm:$0xf] %v586
        $region44: #{tpu_custom_call.1} parent=27 // pred_fallthru
          _
        // Predicated region
        $region45: #{tpu_custom_call.1} parent=27 // pred_check
          %p619 = pneg %p115
        $region46: #{tpu_custom_call.1} parent=27 // pred_check_branch
          %621 = sbr.rel (%p619) target = $region48
        $region47: #{tpu_custom_call.1} parent=27 // pred_region
          %s622 = smul.u32 16, %s25
          %s624 = ssub.s32 1024, 1024
          %625 = vsyncadd [#allocation5], %s624
          %s626 = sadd.s32 %s26, %s622
          %s627 = smul.addr %s626, 64
          %s628 = scalar_lea.hbm %s2, %s627
          %s629 = sshll.u32 [#allocation8], 4
          %s630 = int_to_ptr.vmem [resolvable:$true] %s629
          %635 = dma.vmem_to_hbm [thread:$0]  %s630, 1024, %s628, [#allocation5], 64, 64, 4
        $region48: #{tpu_custom_call.1} parent=27 // pred_fallthru
          _
        // Predicated region
        $region49: #{tpu_custom_call.1} parent=27 // pred_check
          %p636 = pneg %p115
        $region50: #{tpu_custom_call.1} parent=27 // pred_check_branch
          %638 = sbr.rel (%p636) target = $region52
        $region51: #{tpu_custom_call.1} parent=27 // pred_region
          %639 = dma.done [#allocation5], 1024
        $region52: #{tpu_custom_call.1} parent=27 // pred_fallthru
          _
      $region28: #{tpu_custom_call.1} parent=5 // pred_fallthru
        _
      %p640 = scmp.le.s32.totalorder 2, %s15
      // Predicated region
      $region53: #{tpu_custom_call.1} parent=5 // pred_check
        %p641 = pneg %p640
      $region54: #{tpu_custom_call.1} parent=5 // pred_check_branch
        %643 = sbr.rel (%p641) target = $region56
      $region55: #{tpu_custom_call.1} parent=5 // pred_region
        %s644 = ssub.s32 %s15, 2
      $region56: #{tpu_custom_call.1} parent=5 // pred_fallthru
        _
    $region6: #{tpu_custom_call.1} parent=1 // loop_footer
      %s19 = sadd.s32 1, %s15
    $region7: #{tpu_custom_call.1} parent=1 // loop_footer_branch
      %14 = sbr.rel target = $region3
    $region8: #{tpu_custom_call.1} parent=1 // loop_exit
      _
    %645 = vsyncpa [#allocation4], 1
    %s646 = scalar_lea.sflag [#allocation4], 1
    %647 = vsyncpa %s646, 1
    %648 = vsyncpa [#allocation7], 1
    %s649 = scalar_lea.sflag [#allocation7], 1
    %650 = vsyncpa %s649, 1
    %651 = vsyncpa [#allocation5], 1
    %s652 = scalar_lea.sflag [#allocation5], 1
    %653 = vsyncpa %s652, 1

</llo_original>
